<compile_context>
chip_gen: v7x
topology: tpu7x:2x2x1
jax: 0.10.0
libtpu: 0.0.40
codegen_flags: <defaults>
</compile_context>

<pallas_src>
import functools

import jax
import jax.numpy as jnp
from jax.experimental import pallas as pl
from jax.experimental.pallas import tpu as pltpu

EPS = 1e-5


def _shift_lanes(y, s, hw):
    """Return z with z[..., p] = y[..., p + s] (up to wrap-around; wrapped
    positions are zeroed by the caller's boundary mask)."""
    if s == 0:
        return y
    return pltpu.roll(y, shift=(-s) % hw, axis=1)


def _resblock_kernel(W, x_ref, w1_ref, w2_ref, g1_ref, b1_ref, g2_ref,
                     b2_ref, mask_ref, a_ref, o_ref):
    # x_ref : (N, C, HW) f32 VMEM   (lane dim = HW -> lane dense)
    # w1_ref: (C, C)                conv1 weight [Cout, Cin]
    # w2_ref: (C, 9*C)              conv2 weight [Cout, (kh,kw,Cin) flattened]
    # g*/b* : (C, 1)                BN affine params
    # mask  : (9, HW) f32           per-tap spatial validity masks
    # a_ref : (1,) SMEM             shared PReLU alpha
    N, C, HW = x_ref.shape
    alpha = a_ref[0]
    inv_cnt = 1.0 / (N * HW)

    w1 = w1_ref[...]
    w2 = w2_ref[...]

    # ---- conv1 (1x1): per-image channel matmul on the MXU -------------------
    ys = [jnp.dot(w1, x_ref[n], preferred_element_type=jnp.float32)
          for n in range(N)]                                    # N x (C, HW)

    # ---- BN1: single-pass batch statistics (sum, sum of squares) ------------
    s1 = jnp.zeros((C, 1), jnp.float32)
    s2 = jnp.zeros((C, 1), jnp.float32)
    for y in ys:
        s1 = s1 + jnp.sum(y, axis=1, keepdims=True)
        s2 = s2 + jnp.sum(y * y, axis=1, keepdims=True)
    mu = s1 * inv_cnt
    var = s2 * inv_cnt - mu * mu                                # biased variance
    scale = g1_ref[...] * jax.lax.rsqrt(var + EPS)
    bias = b1_ref[...] - mu * scale
    ys = [y * scale + bias for y in ys]
    ys = [jnp.where(y > 0, y, alpha * y) for y in ys]           # PReLU

    # ---- conv2 (3x3, pad 1): im2col via lane rolls + one K=9C matmul --------
    def tap(y, kh, kw):
        t = kh * 3 + kw
        s = (kh - 1) * W + (kw - 1)             # flattened spatial shift
        m = mask_ref[t:t + 1, :]                # (1, HW) validity mask
        return _shift_lanes(y, s, HW) * m

    zs = []
    for y in ys:
        col = jnp.concatenate(
            [tap(y, kh, kw) for kh in range(3) for kw in range(3)], axis=0)
        zs.append(jnp.dot(w2, col, preferred_element_type=jnp.float32))

    # ---- BN2 (single pass) ---------------------------------------------------
    s1 = jnp.zeros((C, 1), jnp.float32)
    s2 = jnp.zeros((C, 1), jnp.float32)
    for z in zs:
        s1 = s1 + jnp.sum(z, axis=1, keepdims=True)
        s2 = s2 + jnp.sum(z * z, axis=1, keepdims=True)
    mu = s1 * inv_cnt
    var = s2 * inv_cnt - mu * mu
    scale = g2_ref[...] * jax.lax.rsqrt(var + EPS)
    bias = b2_ref[...] - mu * scale

    # ---- residual add (re-read x) + PReLU + lane-dense store ----------------
    for n in range(N):
        z = zs[n] * scale + bias + x_ref[n]
        o_ref[n] = jnp.where(z > 0, z, alpha * z).astype(o_ref.dtype)


@jax.jit
def resblock_pallas(x_nchw, w1, w2, g1, b1, g2, b2, alpha):
    """x_nchw: (N, C, H, W) f32. Weights follow PyTorch OIHW conventions."""
    N, C, H, W = x_nchw.shape
    HW = H * W
    x3 = x_nchw.reshape(N, C, HW)                               # no transpose
    w1m = w1[:, :, 0, 0]                                        # (Cout, Cin)
    w2m = jnp.transpose(w2, (0, 2, 3, 1)).reshape(C, 9 * C)     # tap-major K
    g1m, b1m = g1.reshape(C, 1), b1.reshape(C, 1)
    g2m, b2m = g2.reshape(C, 1), b2.reshape(C, 1)
    alpha1 = alpha.reshape(1).astype(jnp.float32)

    # Per-tap validity masks over the flattened spatial index (computed outside
    # the kernel so it needs no integer div/mod along the lane axis).
    r = jnp.arange(HW, dtype=jnp.int32) // W
    c = jnp.arange(HW, dtype=jnp.int32) % W
    masks = []
    for kh in range(3):
        for kw in range(3):
            dy, dx = kh - 1, kw - 1
            ok = (r + dy >= 0) & (r + dy < H) & (c + dx >= 0) & (c + dx < W)
            masks.append(ok.astype(jnp.float32))
    mask = jnp.stack(masks, axis=0)                             # (9, HW)

    out3 = pl.pallas_call(
        functools.partial(_resblock_kernel, W),
        out_shape=jax.ShapeDtypeStruct((N, C, HW), jnp.float32),
        grid=(1,),
        in_specs=[
            pl.BlockSpec((N, C, HW), lambda i: (0, 0, 0)),
            pl.BlockSpec((C, C), lambda i: (0, 0)),
            pl.BlockSpec((C, 9 * C), lambda i: (0, 0)),
            pl.BlockSpec((C, 1), lambda i: (0, 0)),
            pl.BlockSpec((C, 1), lambda i: (0, 0)),
            pl.BlockSpec((C, 1), lambda i: (0, 0)),
            pl.BlockSpec((C, 1), lambda i: (0, 0)),
            pl.BlockSpec((9, HW), lambda i: (0, 0)),
            pl.BlockSpec(memory_space=pltpu.MemorySpace.SMEM),
        ],
        out_specs=pl.BlockSpec((N, C, HW), lambda i: (0, 0, 0)),
        compiler_params=pltpu.CompilerParams(
            dimension_semantics=("arbitrary",),
            vmem_limit_bytes=32 * 1024 * 1024),
    )(x3, w1m, w2m, g1m, b1m, g2m, b2m, mask, alpha1)

    return out3.reshape(N, C, H, W)


# ------------------------------ pure-JAX reference ---------------------------
def _bn_train(y_nchw, gamma, beta):
    mu = jnp.mean(y_nchw, axis=(0, 2, 3), keepdims=True)
    var = jnp.mean((y_nchw - mu) ** 2, axis=(0, 2, 3), keepdims=True)
    return ((y_nchw - mu) * jax.lax.rsqrt(var + EPS)
            * gamma.reshape(1, -1, 1, 1) + beta.reshape(1, -1, 1, 1))


def _prelu(y, alpha):
    return jnp.where(y > 0, y, alpha * y)


def resblock_ref(x, w1, w2, g1, b1, g2, b2, alpha):
    dn = ("NCHW", "OIHW", "NCHW")
    y = jax.lax.conv_general_dilated(x, w1, (1, 1), "VALID",
                                     dimension_numbers=dn,
                                     precision=jax.lax.Precision.HIGHEST)
    y = _prelu(_bn_train(y, g1, b1), alpha)
    y = jax.lax.conv_general_dilated(y, w2, (1, 1), ((1, 1), (1, 1)),
                                     dimension_numbers=dn,
                                     precision=jax.lax.Precision.HIGHEST)
    y = _bn_train(y, g2, b2)
    return _prelu(y + x, alpha)


# ----------------------------------- driver ----------------------------------
if __name__ == "__main__":
    N, C, H, W = 2, 8, 16, 16      # inchannels == outchannels (residual add)
    key = jax.random.PRNGKey(0)
    kx, k1, k2, kg1, kb1, kg2, kb2 = jax.random.split(key, 7)

    x = jax.random.normal(kx, (N, C, H, W), dtype=jnp.float32)
    w1 = jax.random.normal(k1, (C, C, 1, 1), dtype=jnp.float32) * 0.2
    w2 = jax.random.normal(k2, (C, C, 3, 3), dtype=jnp.float32) * 0.1
    g1 = 1.0 + 0.1 * jax.random.normal(kg1, (C,), dtype=jnp.float32)
    b1 = 0.1 * jax.random.normal(kb1, (C,), dtype=jnp.float32)
    g2 = 1.0 + 0.1 * jax.random.normal(kg2, (C,), dtype=jnp.float32)
    b2 = 0.1 * jax.random.normal(kb2, (C,), dtype=jnp.float32)
    alpha = jnp.asarray(0.25, dtype=jnp.float32)   # PReLU default init

    out = resblock_pallas(x, w1, w2, g1, b1, g2, b2, alpha)
    out = jax.block_until_ready(out)

    ref = resblock_ref(x, w1, w2, g1, b1, g2, b2, alpha)
    if not jnp.allclose(out, ref, rtol=5e-3, atol=5e-3):
        raise AssertionError("Pallas ResBlock does not match JAX reference")

    print("KERNEL_OK")
</pallas_src>

<mosaic_0001>
module attributes {stable_mosaic.version = 11 : i64} {
  func.func @_resblock_kernel(%arg0: i32, %arg1: memref<2x8x256xf32, #tpu.memory_space<vmem>>, %arg2: memref<8x8xf32, #tpu.memory_space<vmem>>, %arg3: memref<8x72xf32, #tpu.memory_space<vmem>>, %arg4: memref<8x1xf32, #tpu.memory_space<vmem>>, %arg5: memref<8x1xf32, #tpu.memory_space<vmem>>, %arg6: memref<8x1xf32, #tpu.memory_space<vmem>>, %arg7: memref<8x1xf32, #tpu.memory_space<vmem>>, %arg8: memref<9x256xf32, #tpu.memory_space<vmem>>, %arg9: memref<1xf32, #tpu.memory_space<smem>>, %arg10: memref<2x8x256xf32, #tpu.memory_space<vmem>>) attributes {dimension_semantics = [#tpu.dimension_semantics<arbitrary>], iteration_bounds = array<i64: 1>, scalar_prefetch = 0 : i64, scratch_operands = 0 : i64, tpu.core_type = #tpu.core_type<tc>, window_params = [{pipeline_mode = #tpu.pipeline_mode<synchronous>, transform_indices = @transform_0, window_bounds = array<i64: 2, 8, 256>}, {pipeline_mode = #tpu.pipeline_mode<synchronous>, transform_indices = @transform_1, window_bounds = array<i64: 8, 8>}, {pipeline_mode = #tpu.pipeline_mode<synchronous>, transform_indices = @transform_2, window_bounds = array<i64: 8, 72>}, {pipeline_mode = #tpu.pipeline_mode<synchronous>, transform_indices = @transform_3, window_bounds = array<i64: 8, 1>}, {pipeline_mode = #tpu.pipeline_mode<synchronous>, transform_indices = @transform_4, window_bounds = array<i64: 8, 1>}, {pipeline_mode = #tpu.pipeline_mode<synchronous>, transform_indices = @transform_5, window_bounds = array<i64: 8, 1>}, {pipeline_mode = #tpu.pipeline_mode<synchronous>, transform_indices = @transform_6, window_bounds = array<i64: 8, 1>}, {pipeline_mode = #tpu.pipeline_mode<synchronous>, transform_indices = @transform_7, window_bounds = array<i64: 9, 256>}, {transform_indices = @transform_8, window_bounds = array<i64: 1>}, {pipeline_mode = #tpu.pipeline_mode<synchronous>, transform_indices = @transform_9, window_bounds = array<i64: 2, 8, 256>}]} {
    %c0 = arith.constant 0 : index
    %0 = memref.load %arg9[%c0] : memref<1xf32, #tpu.memory_space<smem>>
    %c0_0 = arith.constant 0 : index
    %c0_1 = arith.constant 0 : index
    %1 = vector.load %arg2[%c0_0, %c0_1] : memref<8x8xf32, #tpu.memory_space<vmem>>, vector<8x8xf32>
    %c0_2 = arith.constant 0 : index
    %c0_3 = arith.constant 0 : index
    %2 = vector.load %arg3[%c0_2, %c0_3] : memref<8x72xf32, #tpu.memory_space<vmem>>, vector<8x72xf32>
    %c0_4 = arith.constant 0 : index
    %c0_5 = arith.constant 0 : index
    %c0_6 = arith.constant 0 : index
    %3 = vector.load %arg1[%c0_4, %c0_5, %c0_6] : memref<2x8x256xf32, #tpu.memory_space<vmem>>, vector<1x8x256xf32>
    %4 = vector.shape_cast %3 : vector<1x8x256xf32> to vector<8x256xf32>
    %cst = arith.constant dense<0.000000e+00> : vector<8x256xf32>
    %5 = tpu.matmul %1, %4, %cst {dimension_numbers = #tpu.dot_dimension_numbers<[1], [0], [0], [1], [0, 0, 1, 1], [], []>} : vector<8x8xf32>, vector<8x256xf32>, vector<8x256xf32> -> vector<8x256xf32>
    %c1 = arith.constant 1 : index
    %c0_7 = arith.constant 0 : index
    %c0_8 = arith.constant 0 : index
    %6 = vector.load %arg1[%c1, %c0_7, %c0_8] : memref<2x8x256xf32, #tpu.memory_space<vmem>>, vector<1x8x256xf32>
    %7 = vector.shape_cast %6 : vector<1x8x256xf32> to vector<8x256xf32>
    %cst_9 = arith.constant dense<0.000000e+00> : vector<8x256xf32>
    %8 = tpu.matmul %1, %7, %cst_9 {dimension_numbers = #tpu.dot_dimension_numbers<[1], [0], [0], [1], [0, 0, 1, 1], [], []>} : vector<8x8xf32>, vector<8x256xf32>, vector<8x256xf32> -> vector<8x256xf32>
    %cst_10 = arith.constant 0.000000e+00 : f32
    %9 = vector.broadcast %cst_10 : f32 to vector<8x1xf32>
    %cst_11 = arith.constant 0.000000e+00 : f32
    %10 = vector.broadcast %cst_11 : f32 to vector<8x1xf32>
    %cst_12 = arith.constant dense<0.000000e+00> : vector<8xf32>
    %11 = vector.multi_reduction <add>, %5, %cst_12 [1] : vector<8x256xf32> to vector<8xf32>
    %12 = vector.shape_cast %11 : vector<8xf32> to vector<8x1xf32>
    %13 = arith.addf %9, %12 : vector<8x1xf32>
    %14 = arith.mulf %5, %5 : vector<8x256xf32>
    %cst_13 = arith.constant dense<0.000000e+00> : vector<8xf32>
    %15 = vector.multi_reduction <add>, %14, %cst_13 [1] : vector<8x256xf32> to vector<8xf32>
    %16 = vector.shape_cast %15 : vector<8xf32> to vector<8x1xf32>
    %17 = arith.addf %10, %16 : vector<8x1xf32>
    %cst_14 = arith.constant dense<0.000000e+00> : vector<8xf32>
    %18 = vector.multi_reduction <add>, %8, %cst_14 [1] : vector<8x256xf32> to vector<8xf32>
    %19 = vector.shape_cast %18 : vector<8xf32> to vector<8x1xf32>
    %20 = arith.addf %13, %19 : vector<8x1xf32>
    %21 = arith.mulf %8, %8 : vector<8x256xf32>
    %cst_15 = arith.constant dense<0.000000e+00> : vector<8xf32>
    %22 = vector.multi_reduction <add>, %21, %cst_15 [1] : vector<8x256xf32> to vector<8xf32>
    %23 = vector.shape_cast %22 : vector<8xf32> to vector<8x1xf32>
    %24 = arith.addf %17, %23 : vector<8x1xf32>
    %cst_16 = arith.constant 0.001953125 : f32
    %25 = vector.broadcast %cst_16 : f32 to vector<8x1xf32>
    %26 = arith.mulf %20, %25 : vector<8x1xf32>
    %cst_17 = arith.constant 0.001953125 : f32
    %27 = vector.broadcast %cst_17 : f32 to vector<8x1xf32>
    %28 = arith.mulf %24, %27 : vector<8x1xf32>
    %29 = arith.mulf %26, %26 : vector<8x1xf32>
    %30 = arith.subf %28, %29 : vector<8x1xf32>
    %c0_18 = arith.constant 0 : index
    %c0_19 = arith.constant 0 : index
    %31 = vector.load %arg4[%c0_18, %c0_19] : memref<8x1xf32, #tpu.memory_space<vmem>>, vector<8x1xf32>
    %cst_20 = arith.constant 9.99999974E-6 : f32
    %32 = vector.broadcast %cst_20 : f32 to vector<8x1xf32>
    %33 = arith.addf %30, %32 : vector<8x1xf32>
    %34 = math.rsqrt %33 : vector<8x1xf32>
    %35 = arith.mulf %31, %34 : vector<8x1xf32>
    %c0_21 = arith.constant 0 : index
    %c0_22 = arith.constant 0 : index
    %36 = vector.load %arg5[%c0_21, %c0_22] : memref<8x1xf32, #tpu.memory_space<vmem>>, vector<8x1xf32>
    %37 = arith.mulf %26, %35 : vector<8x1xf32>
    %38 = arith.subf %36, %37 : vector<8x1xf32>
    %39 = vector.broadcast %35 : vector<8x1xf32> to vector<8x256xf32>
    %40 = arith.mulf %5, %39 : vector<8x256xf32>
    %41 = vector.broadcast %38 : vector<8x1xf32> to vector<8x256xf32>
    %42 = arith.addf %40, %41 : vector<8x256xf32>
    %43 = vector.broadcast %35 : vector<8x1xf32> to vector<8x256xf32>
    %44 = arith.mulf %8, %43 : vector<8x256xf32>
    %45 = vector.broadcast %38 : vector<8x1xf32> to vector<8x256xf32>
    %46 = arith.addf %44, %45 : vector<8x256xf32>
    %cst_23 = arith.constant 0.000000e+00 : f32
    %47 = vector.broadcast %cst_23 : f32 to vector<8x256xf32>
    %48 = arith.cmpf ogt, %42, %47 : vector<8x256xf32>
    %49 = vector.broadcast %0 : f32 to vector<8x256xf32>
    %50 = arith.mulf %49, %42 : vector<8x256xf32>
    %51 = arith.select %48, %42, %50 : vector<8x256xi1>, vector<8x256xf32>
    %cst_24 = arith.constant 0.000000e+00 : f32
    %52 = vector.broadcast %cst_24 : f32 to vector<8x256xf32>
    %53 = arith.cmpf ogt, %46, %52 : vector<8x256xf32>
    %54 = vector.broadcast %0 : f32 to vector<8x256xf32>
    %55 = arith.mulf %54, %46 : vector<8x256xf32>
    %56 = arith.select %53, %46, %55 : vector<8x256xi1>, vector<8x256xf32>
    %c0_25 = arith.constant 0 : index
    %c0_26 = arith.constant 0 : index
    %57 = vector.load %arg8[%c0_25, %c0_26] : memref<9x256xf32, #tpu.memory_space<vmem>>, vector<1x256xf32>
    %c17_i32 = arith.constant 17 : i32
    %58 = tpu.dynamic_rotate %51 by %c17_i32 dim 1 : vector<8x256xf32>, i32 -> vector<8x256xf32>
    %59 = vector.broadcast %57 : vector<1x256xf32> to vector<8x256xf32>
    %60 = arith.mulf %58, %59 : vector<8x256xf32>
    %c1_27 = arith.constant 1 : index
    %c0_28 = arith.constant 0 : index
    %61 = vector.load %arg8[%c1_27, %c0_28] : memref<9x256xf32, #tpu.memory_space<vmem>>, vector<1x256xf32>
    %c16_i32 = arith.constant 16 : i32
    %62 = tpu.dynamic_rotate %51 by %c16_i32 dim 1 : vector<8x256xf32>, i32 -> vector<8x256xf32>
    %63 = vector.broadcast %61 : vector<1x256xf32> to vector<8x256xf32>
    %64 = arith.mulf %62, %63 : vector<8x256xf32>
    %c2 = arith.constant 2 : index
    %c0_29 = arith.constant 0 : index
    %65 = vector.load %arg8[%c2, %c0_29] : memref<9x256xf32, #tpu.memory_space<vmem>>, vector<1x256xf32>
    %c15_i32 = arith.constant 15 : i32
    %66 = tpu.dynamic_rotate %51 by %c15_i32 dim 1 : vector<8x256xf32>, i32 -> vector<8x256xf32>
    %67 = vector.broadcast %65 : vector<1x256xf32> to vector<8x256xf32>
    %68 = arith.mulf %66, %67 : vector<8x256xf32>
    %c3 = arith.constant 3 : index
    %c0_30 = arith.constant 0 : index
    %69 = vector.load %arg8[%c3, %c0_30] : memref<9x256xf32, #tpu.memory_space<vmem>>, vector<1x256xf32>
    %c1_i32 = arith.constant 1 : i32
    %70 = tpu.dynamic_rotate %51 by %c1_i32 dim 1 : vector<8x256xf32>, i32 -> vector<8x256xf32>
    %71 = vector.broadcast %69 : vector<1x256xf32> to vector<8x256xf32>
    %72 = arith.mulf %70, %71 : vector<8x256xf32>
    %c4 = arith.constant 4 : index
    %c0_31 = arith.constant 0 : index
    %73 = vector.load %arg8[%c4, %c0_31] : memref<9x256xf32, #tpu.memory_space<vmem>>, vector<1x256xf32>
    %74 = vector.broadcast %73 : vector<1x256xf32> to vector<8x256xf32>
    %75 = arith.mulf %51, %74 : vector<8x256xf32>
    %c5 = arith.constant 5 : index
    %c0_32 = arith.constant 0 : index
    %76 = vector.load %arg8[%c5, %c0_32] : memref<9x256xf32, #tpu.memory_space<vmem>>, vector<1x256xf32>
    %c255_i32 = arith.constant 255 : i32
    %77 = tpu.dynamic_rotate %51 by %c255_i32 dim 1 : vector<8x256xf32>, i32 -> vector<8x256xf32>
    %78 = vector.broadcast %76 : vector<1x256xf32> to vector<8x256xf32>
    %79 = arith.mulf %77, %78 : vector<8x256xf32>
    %c6 = arith.constant 6 : index
    %c0_33 = arith.constant 0 : index
    %80 = vector.load %arg8[%c6, %c0_33] : memref<9x256xf32, #tpu.memory_space<vmem>>, vector<1x256xf32>
    %c241_i32 = arith.constant 241 : i32
    %81 = tpu.dynamic_rotate %51 by %c241_i32 dim 1 : vector<8x256xf32>, i32 -> vector<8x256xf32>
    %82 = vector.broadcast %80 : vector<1x256xf32> to vector<8x256xf32>
    %83 = arith.mulf %81, %82 : vector<8x256xf32>
    %c7 = arith.constant 7 : index
    %c0_34 = arith.constant 0 : index
    %84 = vector.load %arg8[%c7, %c0_34] : memref<9x256xf32, #tpu.memory_space<vmem>>, vector<1x256xf32>
    %c240_i32 = arith.constant 240 : i32
    %85 = tpu.dynamic_rotate %51 by %c240_i32 dim 1 : vector<8x256xf32>, i32 -> vector<8x256xf32>
    %86 = vector.broadcast %84 : vector<1x256xf32> to vector<8x256xf32>
    %87 = arith.mulf %85, %86 : vector<8x256xf32>
    %c8 = arith.constant 8 : index
    %c0_35 = arith.constant 0 : index
    %88 = vector.load %arg8[%c8, %c0_35] : memref<9x256xf32, #tpu.memory_space<vmem>>, vector<1x256xf32>
    %c239_i32 = arith.constant 239 : i32
    %89 = tpu.dynamic_rotate %51 by %c239_i32 dim 1 : vector<8x256xf32>, i32 -> vector<8x256xf32>
    %90 = vector.broadcast %88 : vector<1x256xf32> to vector<8x256xf32>
    %91 = arith.mulf %89, %90 : vector<8x256xf32>
    %92 = tpu.concatenate %60, %64, %68, %72, %75, %79, %83, %87, %91 in 0 : vector<8x256xf32>, vector<8x256xf32>, vector<8x256xf32>, vector<8x256xf32>, vector<8x256xf32>, vector<8x256xf32>, vector<8x256xf32>, vector<8x256xf32>, vector<8x256xf32> -> vector<72x256xf32>
    %cst_36 = arith.constant dense<0.000000e+00> : vector<8x256xf32>
    %93 = tpu.matmul %2, %92, %cst_36 {dimension_numbers = #tpu.dot_dimension_numbers<[1], [0], [0], [1], [0, 0, 1, 1], [], []>} : vector<8x72xf32>, vector<72x256xf32>, vector<8x256xf32> -> vector<8x256xf32>
    %c0_37 = arith.constant 0 : index
    %c0_38 = arith.constant 0 : index
    %94 = vector.load %arg8[%c0_37, %c0_38] : memref<9x256xf32, #tpu.memory_space<vmem>>, vector<1x256xf32>
    %c17_i32_39 = arith.constant 17 : i32
    %95 = tpu.dynamic_rotate %56 by %c17_i32_39 dim 1 : vector<8x256xf32>, i32 -> vector<8x256xf32>
    %96 = vector.broadcast %94 : vector<1x256xf32> to vector<8x256xf32>
    %97 = arith.mulf %95, %96 : vector<8x256xf32>
    %c1_40 = arith.constant 1 : index
    %c0_41 = arith.constant 0 : index
    %98 = vector.load %arg8[%c1_40, %c0_41] : memref<9x256xf32, #tpu.memory_space<vmem>>, vector<1x256xf32>
    %c16_i32_42 = arith.constant 16 : i32
    %99 = tpu.dynamic_rotate %56 by %c16_i32_42 dim 1 : vector<8x256xf32>, i32 -> vector<8x256xf32>
    %100 = vector.broadcast %98 : vector<1x256xf32> to vector<8x256xf32>
    %101 = arith.mulf %99, %100 : vector<8x256xf32>
    %c2_43 = arith.constant 2 : index
    %c0_44 = arith.constant 0 : index
    %102 = vector.load %arg8[%c2_43, %c0_44] : memref<9x256xf32, #tpu.memory_space<vmem>>, vector<1x256xf32>
    %c15_i32_45 = arith.constant 15 : i32
    %103 = tpu.dynamic_rotate %56 by %c15_i32_45 dim 1 : vector<8x256xf32>, i32 -> vector<8x256xf32>
    %104 = vector.broadcast %102 : vector<1x256xf32> to vector<8x256xf32>
    %105 = arith.mulf %103, %104 : vector<8x256xf32>
    %c3_46 = arith.constant 3 : index
    %c0_47 = arith.constant 0 : index
    %106 = vector.load %arg8[%c3_46, %c0_47] : memref<9x256xf32, #tpu.memory_space<vmem>>, vector<1x256xf32>
    %c1_i32_48 = arith.constant 1 : i32
    %107 = tpu.dynamic_rotate %56 by %c1_i32_48 dim 1 : vector<8x256xf32>, i32 -> vector<8x256xf32>
    %108 = vector.broadcast %106 : vector<1x256xf32> to vector<8x256xf32>
    %109 = arith.mulf %107, %108 : vector<8x256xf32>
    %c4_49 = arith.constant 4 : index
    %c0_50 = arith.constant 0 : index
    %110 = vector.load %arg8[%c4_49, %c0_50] : memref<9x256xf32, #tpu.memory_space<vmem>>, vector<1x256xf32>
    %111 = vector.broadcast %110 : vector<1x256xf32> to vector<8x256xf32>
    %112 = arith.mulf %56, %111 : vector<8x256xf32>
    %c5_51 = arith.constant 5 : index
    %c0_52 = arith.constant 0 : index
    %113 = vector.load %arg8[%c5_51, %c0_52] : memref<9x256xf32, #tpu.memory_space<vmem>>, vector<1x256xf32>
    %c255_i32_53 = arith.constant 255 : i32
    %114 = tpu.dynamic_rotate %56 by %c255_i32_53 dim 1 : vector<8x256xf32>, i32 -> vector<8x256xf32>
    %115 = vector.broadcast %113 : vector<1x256xf32> to vector<8x256xf32>
    %116 = arith.mulf %114, %115 : vector<8x256xf32>
    %c6_54 = arith.constant 6 : index
    %c0_55 = arith.constant 0 : index
    %117 = vector.load %arg8[%c6_54, %c0_55] : memref<9x256xf32, #tpu.memory_space<vmem>>, vector<1x256xf32>
    %c241_i32_56 = arith.constant 241 : i32
    %118 = tpu.dynamic_rotate %56 by %c241_i32_56 dim 1 : vector<8x256xf32>, i32 -> vector<8x256xf32>
    %119 = vector.broadcast %117 : vector<1x256xf32> to vector<8x256xf32>
    %120 = arith.mulf %118, %119 : vector<8x256xf32>
    %c7_57 = arith.constant 7 : index
    %c0_58 = arith.constant 0 : index
    %121 = vector.load %arg8[%c7_57, %c0_58] : memref<9x256xf32, #tpu.memory_space<vmem>>, vector<1x256xf32>
    %c240_i32_59 = arith.constant 240 : i32
    %122 = tpu.dynamic_rotate %56 by %c240_i32_59 dim 1 : vector<8x256xf32>, i32 -> vector<8x256xf32>
    %123 = vector.broadcast %121 : vector<1x256xf32> to vector<8x256xf32>
    %124 = arith.mulf %122, %123 : vector<8x256xf32>
    %c8_60 = arith.constant 8 : index
    %c0_61 = arith.constant 0 : index
    %125 = vector.load %arg8[%c8_60, %c0_61] : memref<9x256xf32, #tpu.memory_space<vmem>>, vector<1x256xf32>
    %c239_i32_62 = arith.constant 239 : i32
    %126 = tpu.dynamic_rotate %56 by %c239_i32_62 dim 1 : vector<8x256xf32>, i32 -> vector<8x256xf32>
    %127 = vector.broadcast %125 : vector<1x256xf32> to vector<8x256xf32>
    %128 = arith.mulf %126, %127 : vector<8x256xf32>
    %129 = tpu.concatenate %97, %101, %105, %109, %112, %116, %120, %124, %128 in 0 : vector<8x256xf32>, vector<8x256xf32>, vector<8x256xf32>, vector<8x256xf32>, vector<8x256xf32>, vector<8x256xf32>, vector<8x256xf32>, vector<8x256xf32>, vector<8x256xf32> -> vector<72x256xf32>
    %cst_63 = arith.constant dense<0.000000e+00> : vector<8x256xf32>
    %130 = tpu.matmul %2, %129, %cst_63 {dimension_numbers = #tpu.dot_dimension_numbers<[1], [0], [0], [1], [0, 0, 1, 1], [], []>} : vector<8x72xf32>, vector<72x256xf32>, vector<8x256xf32> -> vector<8x256xf32>
    %cst_64 = arith.constant 0.000000e+00 : f32
    %131 = vector.broadcast %cst_64 : f32 to vector<8x1xf32>
    %cst_65 = arith.constant 0.000000e+00 : f32
    %132 = vector.broadcast %cst_65 : f32 to vector<8x1xf32>
    %cst_66 = arith.constant dense<0.000000e+00> : vector<8xf32>
    %133 = vector.multi_reduction <add>, %93, %cst_66 [1] : vector<8x256xf32> to vector<8xf32>
    %134 = vector.shape_cast %133 : vector<8xf32> to vector<8x1xf32>
    %135 = arith.addf %131, %134 : vector<8x1xf32>
    %136 = arith.mulf %93, %93 : vector<8x256xf32>
    %cst_67 = arith.constant dense<0.000000e+00> : vector<8xf32>
    %137 = vector.multi_reduction <add>, %136, %cst_67 [1] : vector<8x256xf32> to vector<8xf32>
    %138 = vector.shape_cast %137 : vector<8xf32> to vector<8x1xf32>
    %139 = arith.addf %132, %138 : vector<8x1xf32>
    %cst_68 = arith.constant dense<0.000000e+00> : vector<8xf32>
    %140 = vector.multi_reduction <add>, %130, %cst_68 [1] : vector<8x256xf32> to vector<8xf32>
    %141 = vector.shape_cast %140 : vector<8xf32> to vector<8x1xf32>
    %142 = arith.addf %135, %141 : vector<8x1xf32>
    %143 = arith.mulf %130, %130 : vector<8x256xf32>
    %cst_69 = arith.constant dense<0.000000e+00> : vector<8xf32>
    %144 = vector.multi_reduction <add>, %143, %cst_69 [1] : vector<8x256xf32> to vector<8xf32>
    %145 = vector.shape_cast %144 : vector<8xf32> to vector<8x1xf32>
    %146 = arith.addf %139, %145 : vector<8x1xf32>
    %cst_70 = arith.constant 0.001953125 : f32
    %147 = vector.broadcast %cst_70 : f32 to vector<8x1xf32>
    %148 = arith.mulf %142, %147 : vector<8x1xf32>
    %cst_71 = arith.constant 0.001953125 : f32
    %149 = vector.broadcast %cst_71 : f32 to vector<8x1xf32>
    %150 = arith.mulf %146, %149 : vector<8x1xf32>
    %151 = arith.mulf %148, %148 : vector<8x1xf32>
    %152 = arith.subf %150, %151 : vector<8x1xf32>
    %c0_72 = arith.constant 0 : index
    %c0_73 = arith.constant 0 : index
    %153 = vector.load %arg6[%c0_72, %c0_73] : memref<8x1xf32, #tpu.memory_space<vmem>>, vector<8x1xf32>
    %cst_74 = arith.constant 9.99999974E-6 : f32
    %154 = vector.broadcast %cst_74 : f32 to vector<8x1xf32>
    %155 = arith.addf %152, %154 : vector<8x1xf32>
    %156 = math.rsqrt %155 : vector<8x1xf32>
    %157 = arith.mulf %153, %156 : vector<8x1xf32>
    %c0_75 = arith.constant 0 : index
    %c0_76 = arith.constant 0 : index
    %158 = vector.load %arg7[%c0_75, %c0_76] : memref<8x1xf32, #tpu.memory_space<vmem>>, vector<8x1xf32>
    %159 = arith.mulf %148, %157 : vector<8x1xf32>
    %160 = arith.subf %158, %159 : vector<8x1xf32>
    %161 = vector.broadcast %157 : vector<8x1xf32> to vector<8x256xf32>
    %162 = arith.mulf %93, %161 : vector<8x256xf32>
    %163 = vector.broadcast %160 : vector<8x1xf32> to vector<8x256xf32>
    %164 = arith.addf %162, %163 : vector<8x256xf32>
    %c0_77 = arith.constant 0 : index
    %c0_78 = arith.constant 0 : index
    %c0_79 = arith.constant 0 : index
    %165 = vector.load %arg1[%c0_77, %c0_78, %c0_79] : memref<2x8x256xf32, #tpu.memory_space<vmem>>, vector<1x8x256xf32>
    %166 = vector.shape_cast %165 : vector<1x8x256xf32> to vector<8x256xf32>
    %167 = arith.addf %164, %166 : vector<8x256xf32>
    %cst_80 = arith.constant 0.000000e+00 : f32
    %168 = vector.broadcast %cst_80 : f32 to vector<8x256xf32>
    %169 = arith.cmpf ogt, %167, %168 : vector<8x256xf32>
    %170 = vector.broadcast %0 : f32 to vector<8x256xf32>
    %171 = arith.mulf %170, %167 : vector<8x256xf32>
    %172 = arith.select %169, %167, %171 : vector<8x256xi1>, vector<8x256xf32>
    %c0_81 = arith.constant 0 : index
    %c0_82 = arith.constant 0 : index
    %c0_83 = arith.constant 0 : index
    %173 = vector.load %arg10[%c0_81, %c0_82, %c0_83] : memref<2x8x256xf32, #tpu.memory_space<vmem>>, vector<1x8x256xf32>
    %174 = vector.shape_cast %173 : vector<1x8x256xf32> to vector<8x256xf32>
    %175 = vector.shape_cast %172 : vector<8x256xf32> to vector<1x8x256xf32>
    tpu.vector_store %arg10[%c0_81, %c0_82, %c0_83], %175 {strides = array<i32>} : memref<2x8x256xf32, #tpu.memory_space<vmem>>, vector<1x8x256xf32>,
    %176 = vector.broadcast %157 : vector<8x1xf32> to vector<8x256xf32>
    %177 = arith.mulf %130, %176 : vector<8x256xf32>
    %178 = vector.broadcast %160 : vector<8x1xf32> to vector<8x256xf32>
    %179 = arith.addf %177, %178 : vector<8x256xf32>
    %c1_84 = arith.constant 1 : index
    %c0_85 = arith.constant 0 : index
    %c0_86 = arith.constant 0 : index
    %180 = vector.load %arg1[%c1_84, %c0_85, %c0_86] : memref<2x8x256xf32, #tpu.memory_space<vmem>>, vector<1x8x256xf32>
    %181 = vector.shape_cast %180 : vector<1x8x256xf32> to vector<8x256xf32>
    %182 = arith.addf %179, %181 : vector<8x256xf32>
    %cst_87 = arith.constant 0.000000e+00 : f32
    %183 = vector.broadcast %cst_87 : f32 to vector<8x256xf32>
    %184 = arith.cmpf ogt, %182, %183 : vector<8x256xf32>
    %185 = vector.broadcast %0 : f32 to vector<8x256xf32>
    %186 = arith.mulf %185, %182 : vector<8x256xf32>
    %187 = arith.select %184, %182, %186 : vector<8x256xi1>, vector<8x256xf32>
    %c1_88 = arith.constant 1 : index
    %c0_89 = arith.constant 0 : index
    %c0_90 = arith.constant 0 : index
    %188 = vector.load %arg10[%c1_88, %c0_89, %c0_90] : memref<2x8x256xf32, #tpu.memory_space<vmem>>, vector<1x8x256xf32>
    %189 = vector.shape_cast %188 : vector<1x8x256xf32> to vector<8x256xf32>
    %190 = vector.shape_cast %187 : vector<8x256xf32> to vector<1x8x256xf32>
    tpu.vector_store %arg10[%c1_88, %c0_89, %c0_90], %190 {strides = array<i32>} : memref<2x8x256xf32, #tpu.memory_space<vmem>>, vector<1x8x256xf32>,
    return
  }
  func.func @transform_0(%arg0: i32) -> (i32, i32, i32) {
    %c0_i32 = arith.constant 0 : i32
    %c0_i32_0 = arith.constant 0 : i32
    %c0_i32_1 = arith.constant 0 : i32
    %c0_i32_2 = arith.constant 0 : i32
    return %c0_i32, %c0_i32_0, %c0_i32_1 : i32, i32, i32
  }
  func.func @transform_1(%arg0: i32) -> (i32, i32) {
    %c0_i32 = arith.constant 0 : i32
    %c0_i32_0 = arith.constant 0 : i32
    %c0_i32_1 = arith.constant 0 : i32
    return %c0_i32, %c0_i32_0 : i32, i32
  }
  func.func @transform_2(%arg0: i32) -> (i32, i32) {
    %c0_i32 = arith.constant 0 : i32
    %c0_i32_0 = arith.constant 0 : i32
    %c0_i32_1 = arith.constant 0 : i32
    return %c0_i32, %c0_i32_0 : i32, i32
  }
  func.func @transform_3(%arg0: i32) -> (i32, i32) {
    %c0_i32 = arith.constant 0 : i32
    %c0_i32_0 = arith.constant 0 : i32
    %c0_i32_1 = arith.constant 0 : i32
    return %c0_i32, %c0_i32_0 : i32, i32
  }
  func.func @transform_4(%arg0: i32) -> (i32, i32) {
    %c0_i32 = arith.constant 0 : i32
    %c0_i32_0 = arith.constant 0 : i32
    %c0_i32_1 = arith.constant 0 : i32
    return %c0_i32, %c0_i32_0 : i32, i32
  }
  func.func @transform_5(%arg0: i32) -> (i32, i32) {
    %c0_i32 = arith.constant 0 : i32
    %c0_i32_0 = arith.constant 0 : i32
    %c0_i32_1 = arith.constant 0 : i32
    return %c0_i32, %c0_i32_0 : i32, i32
  }
  func.func @transform_6(%arg0: i32) -> (i32, i32) {
    %c0_i32 = arith.constant 0 : i32
    %c0_i32_0 = arith.constant 0 : i32
    %c0_i32_1 = arith.constant 0 : i32
    return %c0_i32, %c0_i32_0 : i32, i32
  }
  func.func @transform_7(%arg0: i32) -> (i32, i32) {
    %c0_i32 = arith.constant 0 : i32
    %c0_i32_0 = arith.constant 0 : i32
    %c0_i32_1 = arith.constant 0 : i32
    return %c0_i32, %c0_i32_0 : i32, i32
  }
  func.func @transform_8(%arg0: i32) -> i32 {
    %c0_i32 = arith.constant 0 : i32
    %c0_i32_0 = arith.constant 0 : i32
    return %c0_i32 : i32
  }
  func.func @transform_9(%arg0: i32) -> (i32, i32, i32) {
    %c0_i32 = arith.constant 0 : i32
    %c0_i32_0 = arith.constant 0 : i32
    %c0_i32_1 = arith.constant 0 : i32
    %c0_i32_2 = arith.constant 0 : i32
    return %c0_i32, %c0_i32_0, %c0_i32_1 : i32, i32, i32
  }
}

</mosaic_0001>

<llo_original>
// kernel: resblock_pallas.1
$region0: #{resblock_pallas.1}
  #allocation0 [shape = 'u32[]', space=smem, size = 0x4, offset = 0x4, fixed_abs, tag = 'smem constant byte address 0x4 - core index']
  #allocation1 [shape = 'u32[144,128]{1,0:T(1,128)}', space=vmem, size = 0x12000, scoped, tag = 'internal scratch']
  #allocation2 [shape = 'f32[1]{0:T(128)S(6)}', space=smem, size = 0x200, scoped, tag = 'scoped memory for resblock_pallas.1']
  %s0 = inlined_call_operand.vmem [shape: f32[2,8,256], index: 0, kind: input, shape index: {}]
  %s1 = inlined_call_operand.vmem [shape: f32[8,8], index: 1, kind: input, shape index: {}]
  %s2 = inlined_call_operand.vmem [shape: f32[8,72], index: 2, kind: input, shape index: {}]
  %s3 = inlined_call_operand.vmem [shape: f32[8,1], index: 3, kind: input, shape index: {}]
  %s4 = inlined_call_operand.vmem [shape: f32[8,1], index: 4, kind: input, shape index: {}]
  %s5 = inlined_call_operand.vmem [shape: f32[8,1], index: 5, kind: input, shape index: {}]
  %s6 = inlined_call_operand.vmem [shape: f32[8,1], index: 6, kind: input, shape index: {}]
  %s7 = inlined_call_operand.vmem [shape: f32[9,256], index: 7, kind: input, shape index: {}]
  %s8 = inlined_call_operand.<no memory space> [shape: f32[1], index: 8, kind: input, shape index: {}]
  %s9 = inlined_call_operand.vmem [shape: f32[2,8,256], index: 9, kind: output, shape index: {}]
  %s10 = sld [smem:[#allocation0]]
  $region46: #{resblock_pallas.1} parent=0
    _
  %s12 = ssub.s32 1, %s10
  %s13 = scalar_select 0, %s12, %s10
  %14 = sst [smem:[#allocation2]] %s8
  // Predicated region
  $region2: #{resblock_pallas.1} parent=0 // pred_check
    _
  $region3: #{resblock_pallas.1} parent=0 // pred_check_branch
    %16 = sbr.rel (0) target = $region5
  $region4: #{resblock_pallas.1} parent=0 // pred_region
    _
  $region5: #{resblock_pallas.1} parent=0 // pred_fallthru
    _
  // Predicated region
  $region6: #{resblock_pallas.1} parent=0 // pred_check
    _
  $region7: #{resblock_pallas.1} parent=0 // pred_check_branch
    %18 = sbr.rel (0) target = $region9
  $region8: #{resblock_pallas.1} parent=0 // pred_region
    _
  $region9: #{resblock_pallas.1} parent=0 // pred_fallthru
    _
  // Predicated region
  $region10: #{resblock_pallas.1} parent=0 // pred_check
    _
  $region11: #{resblock_pallas.1} parent=0 // pred_check_branch
    %20 = sbr.rel (0) target = $region13
  $region12: #{resblock_pallas.1} parent=0 // pred_region
    _
  $region13: #{resblock_pallas.1} parent=0 // pred_fallthru
    _
  // Predicated region
  $region14: #{resblock_pallas.1} parent=0 // pred_check
    _
  $region15: #{resblock_pallas.1} parent=0 // pred_check_branch
    %22 = sbr.rel (0) target = $region17
  $region16: #{resblock_pallas.1} parent=0 // pred_region
    _
  $region17: #{resblock_pallas.1} parent=0 // pred_fallthru
    _
  // Predicated region
  $region18: #{resblock_pallas.1} parent=0 // pred_check
    _
  $region19: #{resblock_pallas.1} parent=0 // pred_check_branch
    %24 = sbr.rel (0) target = $region21
  $region20: #{resblock_pallas.1} parent=0 // pred_region
    _
  $region21: #{resblock_pallas.1} parent=0 // pred_fallthru
    _
  // Predicated region
  $region22: #{resblock_pallas.1} parent=0 // pred_check
    _
  $region23: #{resblock_pallas.1} parent=0 // pred_check_branch
    %26 = sbr.rel (0) target = $region25
  $region24: #{resblock_pallas.1} parent=0 // pred_region
    _
  $region25: #{resblock_pallas.1} parent=0 // pred_fallthru
    _
  // Predicated region
  $region26: #{resblock_pallas.1} parent=0 // pred_check
    _
  $region27: #{resblock_pallas.1} parent=0 // pred_check_branch
    %28 = sbr.rel (0) target = $region29
  $region28: #{resblock_pallas.1} parent=0 // pred_region
    _
  $region29: #{resblock_pallas.1} parent=0 // pred_fallthru
    _
  // Predicated region
  $region30: #{resblock_pallas.1} parent=0 // pred_check
    _
  $region31: #{resblock_pallas.1} parent=0 // pred_check_branch
    %30 = sbr.rel (0) target = $region33
  $region32: #{resblock_pallas.1} parent=0 // pred_region
    _
  $region33: #{resblock_pallas.1} parent=0 // pred_fallthru
    _
  // Predicated region
  $region34: #{resblock_pallas.1} parent=0 // pred_check
    _
  $region35: #{resblock_pallas.1} parent=0 // pred_check_branch
    %32 = sbr.rel (0) target = $region37
  $region36: #{resblock_pallas.1} parent=0 // pred_region
    _
  $region37: #{resblock_pallas.1} parent=0 // pred_fallthru
    _
  %s33 = sld [smem:[#allocation2]]
  %v34 = vld [vmem:[%s1] sm:$0xff]
  %v35 = vld [vmem:[%s2] sm:$0xff]
  %v36 = vld [vmem:[%s0] sm:$0xff]
  %v37 = vld [vmem:[%s0 + $0x8] sm:$0xff]
  %vm38 = vcmask 64512
  %v40 = vsel %vm38, %v34, 0
  %42 = vmatprep.subr.mxu0 %v37
  %43 = vmatpush1.msra.mxu0 %v36
  %44 = vmatprep.subr.mxu0 0.0
  %45 = vmatpush1.msra.mxu0 0.0
  %46 = vmatprep.subr.mxu0 0.0
  %47 = vmatpush1.msra.mxu0 0.0
  %48 = vmatprep.subr.mxu0 0.0
  %49 = vmatpush1.msra.mxu0 0.0
  %50 = vmatprep.subr.mxu0 0.0
  %51 = vmatpush1.msra.mxu0 0.0
  %52 = vmatprep.subr.mxu0 0.0
  %53 = vmatpush1.msra.mxu0 0.0
  %54 = vmatprep.subr.mxu0 0.0
  %55 = vmatpush1.msra.mxu0 0.0
  %56 = vmatprep.subr.mxu0 0.0
  %57 = vmatpush1.msra.mxu0 0.0
  %58 = vmatprep.subr.mxu0 0.0
  %59 = vmatpush1.msra.mxu0 0.0
  %60 = vmatprep.subr.mxu0 0.0
  %61 = vmatpush1.msra.mxu0 0.0
  %62 = vmatprep.subr.mxu0 0.0
  %63 = vmatpush1.msra.mxu0 0.0
  %64 = vmatprep.subr.mxu0 0.0
  %65 = vmatpush1.msra.mxu0 0.0
  %66 = vmatprep.subr.mxu0 0.0
  %67 = vmatpush1.msra.mxu0 0.0
  %68 = vmatprep.subr.mxu0 0.0
  %69 = vmatpush1.msra.mxu0 0.0
  %70 = vmatprep.subr.mxu0 0.0
  %71 = vmatpush1.msra.mxu0 0.0
  %72 = vmatprep.subr.mxu0 0.0
  %73 = vmatpush1.msra.mxu0 0.0
  %74 = vmatprep.subr.mxu0 0.0
  %75 = vmatpush1.msra.mxu0 0.0
  %76 = vmatprep.subr.mxu0 0.0
  %77 = vmatpush1.msra.mxu0 0.0
  %78 = vmatprep.subr.mxu0 0.0
  %79 = vmatpush1.msra.mxu0 0.0
  %80 = vmatprep.subr.mxu0 0.0
  %81 = vmatpush1.msra.mxu0 0.0
  %82 = vmatprep.subr.mxu0 0.0
  %83 = vmatpush1.msra.mxu0 0.0
  %84 = vmatprep.subr.mxu0 0.0
  %85 = vmatpush1.msra.mxu0 0.0
  %86 = vmatprep.subr.mxu0 0.0
  %87 = vmatpush1.msra.mxu0 0.0
  %88 = vmatprep.subr.mxu0 0.0
  %89 = vmatpush1.msra.mxu0 0.0
  %90 = vmatprep.subr.mxu0 0.0
  %91 = vmatpush1.msra.mxu0 0.0
  %92 = vmatprep.subr.mxu0 0.0
  %93 = vmatpush1.msra.mxu0 0.0
  %94 = vmatprep.subr.mxu0 0.0
  %95 = vmatpush1.msra.mxu0 0.0
  %96 = vmatprep.subr.mxu0 0.0
  %97 = vmatpush1.msra.mxu0 0.0
  %98 = vmatprep.subr.mxu0 0.0
  %99 = vmatpush1.msra.mxu0 0.0
  %100 = vmatprep.subr.mxu0 0.0
  %101 = vmatpush1.msra.mxu0 0.0
  %102 = vmatprep.subr.mxu0 0.0
  %103 = vmatpush1.msra.mxu0 0.0
  %104 = vmatprep.subr.mxu0 0.0
  %105 = vmatpush1.msra.mxu0 0.0
  %106 = vmatprep.mubr.f32.mxu0 0.0
  %107 = vmatmul.mubr.f32.gmra.mrb[0].mxu0 %v40
  %v108 = vpop.f32.mrb[0].mxu0
  %v109 = vadd.f32 0.0, %v108
  %v110 = vpop.f32.mrb[0].mxu0
  %v111 = vadd.f32 0.0, %v110
  %112 = vdwg.mxu0
  %s113 = scalar_lea.vmem %s0, 16
  %v114 = vld [vmem:[%s113] sm:$0xff]
  %v115 = vld [vmem:[%s113 + $0x8] sm:$0xff]
  %116 = vmatprep.subr.mxu0 %v115
  %117 = vmatpush1.msra.mxu0 %v114
  %118 = vmatprep.subr.mxu0 0.0
  %119 = vmatpush1.msra.mxu0 0.0
  %120 = vmatprep.subr.mxu0 0.0
  %121 = vmatpush1.msra.mxu0 0.0
  %122 = vmatprep.subr.mxu0 0.0
  %123 = vmatpush1.msra.mxu0 0.0
  %124 = vmatprep.subr.mxu0 0.0
  %125 = vmatpush1.msra.mxu0 0.0
  %126 = vmatprep.subr.mxu0 0.0
  %127 = vmatpush1.msra.mxu0 0.0
  %128 = vmatprep.subr.mxu0 0.0
  %129 = vmatpush1.msra.mxu0 0.0
  %130 = vmatprep.subr.mxu0 0.0
  %131 = vmatpush1.msra.mxu0 0.0
  %132 = vmatprep.subr.mxu0 0.0
  %133 = vmatpush1.msra.mxu0 0.0
  %134 = vmatprep.subr.mxu0 0.0
  %135 = vmatpush1.msra.mxu0 0.0
  %136 = vmatprep.subr.mxu0 0.0
  %137 = vmatpush1.msra.mxu0 0.0
  %138 = vmatprep.subr.mxu0 0.0
  %139 = vmatpush1.msra.mxu0 0.0
  %140 = vmatprep.subr.mxu0 0.0
  %141 = vmatpush1.msra.mxu0 0.0
  %142 = vmatprep.subr.mxu0 0.0
  %143 = vmatpush1.msra.mxu0 0.0
  %144 = vmatprep.subr.mxu0 0.0
  %145 = vmatpush1.msra.mxu0 0.0
  %146 = vmatprep.subr.mxu0 0.0
  %147 = vmatpush1.msra.mxu0 0.0
  %148 = vmatprep.subr.mxu0 0.0
  %149 = vmatpush1.msra.mxu0 0.0
  %150 = vmatprep.subr.mxu0 0.0
  %151 = vmatpush1.msra.mxu0 0.0
  %152 = vmatprep.subr.mxu0 0.0
  %153 = vmatpush1.msra.mxu0 0.0
  %154 = vmatprep.subr.mxu0 0.0
  %155 = vmatpush1.msra.mxu0 0.0
  %156 = vmatprep.subr.mxu0 0.0
  %157 = vmatpush1.msra.mxu0 0.0
  %158 = vmatprep.subr.mxu0 0.0
  %159 = vmatpush1.msra.mxu0 0.0
  %160 = vmatprep.subr.mxu0 0.0
  %161 = vmatpush1.msra.mxu0 0.0
  %162 = vmatprep.subr.mxu0 0.0
  %163 = vmatpush1.msra.mxu0 0.0
  %164 = vmatprep.subr.mxu0 0.0
  %165 = vmatpush1.msra.mxu0 0.0
  %166 = vmatprep.subr.mxu0 0.0
  %167 = vmatpush1.msra.mxu0 0.0
  %168 = vmatprep.subr.mxu0 0.0
  %169 = vmatpush1.msra.mxu0 0.0
  %170 = vmatprep.subr.mxu0 0.0
  %171 = vmatpush1.msra.mxu0 0.0
  %172 = vmatprep.subr.mxu0 0.0
  %173 = vmatpush1.msra.mxu0 0.0
  %174 = vmatprep.subr.mxu0 0.0
  %175 = vmatpush1.msra.mxu0 0.0
  %176 = vmatprep.subr.mxu0 0.0
  %177 = vmatpush1.msra.mxu0 0.0
  %178 = vmatprep.subr.mxu0 0.0
  %179 = vmatpush1.msra.mxu0 0.0
  %180 = vmatprep.mubr.f32.mxu0 0.0
  %181 = vmatmul.mubr.f32.gmra.mrb[0].mxu0 %v40
  %v182 = vpop.f32.mrb[0].mxu0
  %v183 = vadd.f32 0.0, %v182
  %v184 = vpop.f32.mrb[0].mxu0
  %v185 = vadd.f32 0.0, %v184
  %186 = vdwg.mxu0
  %v187 = vadd.f32 %v109, %v111
  %188 = vadd.xlane.f32.xlu0 %v187
  %v189 = vpop.xlane.xlu0 %188
  %v190 = vadd.f32 %v189, 0.0
  %v191 = vmul.f32 %v109, %v109
  %v192 = vmul.f32 %v111, %v111
  %v193 = vadd.f32 %v191, %v192
  %194 = vadd.xlane.f32.xlu0 %v193
  %v195 = vpop.xlane.xlu0 %194
  %v196 = vadd.f32 %v195, 0.0
  %v197 = vadd.f32 %v183, %v185
  %198 = vadd.xlane.f32.xlu0 %v197
  %v199 = vpop.xlane.xlu0 %198
  %v200 = vadd.f32 %v190, %v199
  %v201 = vmul.f32 %v183, %v183
  %v202 = vmul.f32 %v185, %v185
  %v203 = vadd.f32 %v201, %v202
  %204 = vadd.xlane.f32.xlu0 %v203
  %v205 = vpop.xlane.xlu0 %204
  %v206 = vadd.f32 %v196, %v205
  %v207 = vmul.f32 %v200, 0.001953125
  %v208 = vmul.f32 %v206, 0.001953125
  %v209 = vmul.f32 %v207, %v207
  %v210 = vsub.f32 %v208, %v209
  %v211 = vld [vmem:[%s3] sm:$0xff]
  %v212 = vadd.f32 %v210, 1e-05
  %v213 = vrsqrt.pop %v212
  %v214 = vmul.f32 %v211, %v213
  %v215 = vld [vmem:[%s4] sm:$0xff]
  %v216 = vmul.f32 %v207, %v214
  %v217 = vsub.f32 %v215, %v216
  %219 = vset.pattern.permute.xlu0 0
  %220 = vperm.xlu0 %219, %v214
  %v221 = vpop.permute.xlu0 %220
  %v223 = vmul.f32 %v109, %v221
  %v224 = vmul.f32 %v111, %v221
  %226 = vset.pattern.permute.xlu0 0
  %227 = vperm.xlu0 %226, %v217
  %v228 = vpop.permute.xlu0 %227
  %v230 = vadd.f32 %v223, %v228
  %v231 = vadd.f32 %v224, %v228
  %v232 = vmul.f32 %v183, %v221
  %v233 = vmul.f32 %v185, %v221
  %v234 = vadd.f32 %v232, %v228
  %v235 = vadd.f32 %v233, %v228
  %vm236 = vcmp.gt.f32.partialorder %v230, 0.0
  %vm237 = vcmp.gt.f32.partialorder %v231, 0.0
  %v238 = vstv %s33
  %v239 = vmul.f32 %v238, %v230
  %v240 = vmul.f32 %v238, %v231
  %v241 = vsel %vm236, %v230, %v239
  %v242 = vsel %vm237, %v231, %v240
  %vm243 = vcmp.gt.f32.partialorder %v234, 0.0
  %vm244 = vcmp.gt.f32.partialorder %v235, 0.0
  %v245 = vmul.f32 %v238, %v234
  %v246 = vmul.f32 %v238, %v235
  %v247 = vsel %vm243, %v234, %v245
  %v248 = vsel %vm244, %v235, %v246
  %v249 = vld [vmem:[%s7] ss:$8 sm:$0x3]
  %250 = vrot.lane.b32.xlu0 %v241, 17
  %v251 = vpop.permute.xlu0 %250
  %252 = vrot.lane.b32.xlu0 %v242, 17
  %v253 = vpop.permute.xlu0 %252
  %v254 = vlaneseq
  %v255 = vand.u32 %v254, 127
  %vm256 = vcmp.lt.s32.totalorder %v255, 17
  %v257 = vsel %vm256, %v251, %v253
  %v258 = vsel %vm256, %v253, %v251
  %v260 = vlaneseq
  %v261 = vshrl.u32 %v260, 7
  %v262 = vsub.s32 0, %v261
  %v263 = vrot.slane %v249, %v262
  %v264 = vlaneseq
  %v265 = vshrl.u32 %v264, 7
  %v266 = vsub.s32 1, %v265
  %v267 = vrot.slane %v249, %v266
  %v270 = vmul.f32 %v258, %v263
  %v271 = vmul.f32 %v257, %v267
  %s272 = scalar_lea.vmem %s7, 1
  %v273 = vld [vmem:[%s272] ss:$8 sm:$0x3]
  %274 = vrot.lane.b32.xlu0 %v241, 16
  %v275 = vpop.permute.xlu0 %274
  %276 = vrot.lane.b32.xlu0 %v242, 16
  %v277 = vpop.permute.xlu0 %276
  %vm278 = vcmp.lt.s32.totalorder %v255, 16
  %v279 = vsel %vm278, %v275, %v277
  %v280 = vsel %vm278, %v277, %v275
  %v282 = vlaneseq
  %v283 = vshrl.u32 %v282, 7
  %v284 = vsub.s32 0, %v283
  %v285 = vrot.slane %v273, %v284
  %v286 = vlaneseq
  %v287 = vshrl.u32 %v286, 7
  %v288 = vsub.s32 1, %v287
  %v289 = vrot.slane %v273, %v288
  %v292 = vmul.f32 %v280, %v285
  %v293 = vmul.f32 %v279, %v289
  %s294 = scalar_lea.vmem %s7, 2
  %v295 = vld [vmem:[%s294] ss:$8 sm:$0x3]
  %296 = vrot.lane.b32.xlu0 %v241, 15
  %v297 = vpop.permute.xlu0 %296
  %298 = vrot.lane.b32.xlu0 %v242, 15
  %v299 = vpop.permute.xlu0 %298
  %vm300 = vcmp.lt.s32.totalorder %v255, 15
  %v301 = vsel %vm300, %v297, %v299
  %v302 = vsel %vm300, %v299, %v297
  %v304 = vlaneseq
  %v305 = vshrl.u32 %v304, 7
  %v306 = vsub.s32 0, %v305
  %v307 = vrot.slane %v295, %v306
  %v308 = vlaneseq
  %v309 = vshrl.u32 %v308, 7
  %v310 = vsub.s32 1, %v309
  %v311 = vrot.slane %v295, %v310
  %v314 = vmul.f32 %v302, %v307
  %v315 = vmul.f32 %v301, %v311
  %s316 = scalar_lea.vmem %s7, 3
  %v317 = vld [vmem:[%s316] ss:$8 sm:$0x3]
  %318 = vrot.lane.b32.xlu0 %v241, 1
  %v319 = vpop.permute.xlu0 %318
  %320 = vrot.lane.b32.xlu0 %v242, 1
  %v321 = vpop.permute.xlu0 %320
  %vm322 = vcmp.lt.s32.totalorder %v255, 1
  %v323 = vsel %vm322, %v319, %v321
  %v324 = vsel %vm322, %v321, %v319
  %v326 = vlaneseq
  %v327 = vshrl.u32 %v326, 7
  %v328 = vsub.s32 0, %v327
  %v329 = vrot.slane %v317, %v328
  %v330 = vlaneseq
  %v331 = vshrl.u32 %v330, 7
  %v332 = vsub.s32 1, %v331
  %v333 = vrot.slane %v317, %v332
  %v336 = vmul.f32 %v324, %v329
  %v337 = vmul.f32 %v323, %v333
  %s338 = scalar_lea.vmem %s7, 4
  %v339 = vld [vmem:[%s338] ss:$8 sm:$0x3]
  %v341 = vlaneseq
  %v342 = vshrl.u32 %v341, 7
  %v343 = vsub.s32 0, %v342
  %v344 = vrot.slane %v339, %v343
  %v345 = vlaneseq
  %v346 = vshrl.u32 %v345, 7
  %v347 = vsub.s32 1, %v346
  %v348 = vrot.slane %v339, %v347
  %v351 = vmul.f32 %v241, %v344
  %v352 = vmul.f32 %v242, %v348
  %s353 = scalar_lea.vmem %s7, 5
  %v354 = vld [vmem:[%s353] ss:$8 sm:$0x3]
  %355 = vrot.lane.b32.xlu0 %v241, 127
  %v356 = vpop.permute.xlu0 %355
  %357 = vrot.lane.b32.xlu0 %v242, 127
  %v358 = vpop.permute.xlu0 %357
  %vm359 = vcmp.lt.s32.totalorder %v255, 127
  %v360 = vsel %vm359, %v356, %v358
  %v361 = vsel %vm359, %v358, %v356
  %v363 = vlaneseq
  %v364 = vshrl.u32 %v363, 7
  %v365 = vsub.s32 0, %v364
  %v366 = vrot.slane %v354, %v365
  %v367 = vlaneseq
  %v368 = vshrl.u32 %v367, 7
  %v369 = vsub.s32 1, %v368
  %v370 = vrot.slane %v354, %v369
  %v373 = vmul.f32 %v360, %v366
  %v374 = vmul.f32 %v361, %v370
  %s375 = scalar_lea.vmem %s7, 6
  %v376 = vld [vmem:[%s375] ss:$8 sm:$0x3]
  %377 = vrot.lane.b32.xlu0 %v241, 113
  %v378 = vpop.permute.xlu0 %377
  %379 = vrot.lane.b32.xlu0 %v242, 113
  %v380 = vpop.permute.xlu0 %379
  %vm381 = vcmp.lt.s32.totalorder %v255, 113
  %v382 = vsel %vm381, %v378, %v380
  %v383 = vsel %vm381, %v380, %v378
  %v385 = vlaneseq
  %v386 = vshrl.u32 %v385, 7
  %v387 = vsub.s32 0, %v386
  %v388 = vrot.slane %v376, %v387
  %v389 = vlaneseq
  %v390 = vshrl.u32 %v389, 7
  %v391 = vsub.s32 1, %v390
  %v392 = vrot.slane %v376, %v391
  %v395 = vmul.f32 %v382, %v388
  %v396 = vmul.f32 %v383, %v392
  %s397 = scalar_lea.vmem %s7, 7
  %v398 = vld [vmem:[%s397] ss:$8 sm:$0x3]
  %399 = vrot.lane.b32.xlu0 %v241, 112
  %v400 = vpop.permute.xlu0 %399
  %401 = vrot.lane.b32.xlu0 %v242, 112
  %v402 = vpop.permute.xlu0 %401
  %vm403 = vcmp.lt.s32.totalorder %v255, 112
  %v404 = vsel %vm403, %v400, %v402
  %v405 = vsel %vm403, %v402, %v400
  %v407 = vlaneseq
  %v408 = vshrl.u32 %v407, 7
  %v409 = vsub.s32 0, %v408
  %v410 = vrot.slane %v398, %v409
  %v411 = vlaneseq
  %v412 = vshrl.u32 %v411, 7
  %v413 = vsub.s32 1, %v412
  %v414 = vrot.slane %v398, %v413
  %v417 = vmul.f32 %v404, %v410
  %v418 = vmul.f32 %v405, %v414
  %s419 = scalar_lea.vmem %s7, 16
  %v420 = vld [vmem:[%s419] ss:$8 sm:$0x3]
  %421 = vrot.lane.b32.xlu0 %v241, 111
  %v422 = vpop.permute.xlu0 %421
  %423 = vrot.lane.b32.xlu0 %v242, 111
  %v424 = vpop.permute.xlu0 %423
  %vm425 = vcmp.lt.s32.totalorder %v255, 111
  %v426 = vsel %vm425, %v422, %v424
  %v427 = vsel %vm425, %v424, %v422
  %v429 = vlaneseq
  %v430 = vshrl.u32 %v429, 7
  %v431 = vsub.s32 0, %v430
  %v432 = vrot.slane %v420, %v431
  %v433 = vlaneseq
  %v434 = vshrl.u32 %v433, 7
  %v435 = vsub.s32 1, %v434
  %v436 = vrot.slane %v420, %v435
  %v439 = vmul.f32 %v426, %v432
  %v440 = vmul.f32 %v427, %v436
  %vm441 = vcmask 588800
  %v443 = vsel %vm441, %v35, 0
  %445 = vmatprep.subr.mxu0 %v271
  %446 = vmatpush1.msra.mxu0 %v270
  %447 = vmatprep.subr.mxu0 %v293
  %448 = vmatpush1.msra.mxu0 %v292
  %449 = vmatprep.subr.mxu0 %v315
  %450 = vmatpush1.msra.mxu0 %v314
  %451 = vmatprep.subr.mxu0 %v337
  %452 = vmatpush1.msra.mxu0 %v336
  %453 = vmatprep.subr.mxu0 %v352
  %454 = vmatpush1.msra.mxu0 %v351
  %455 = vmatprep.subr.mxu0 %v374
  %456 = vmatpush1.msra.mxu0 %v373
  %457 = vmatprep.subr.mxu0 %v396
  %458 = vmatpush1.msra.mxu0 %v395
  %459 = vmatprep.subr.mxu0 %v418
  %460 = vmatpush1.msra.mxu0 %v417
  %461 = vmatprep.subr.mxu0 %v440
  %462 = vmatpush1.msra.mxu0 %v439
  %463 = vmatprep.subr.mxu0 0.0
  %464 = vmatpush1.msra.mxu0 0.0
  %465 = vmatprep.subr.mxu0 0.0
  %466 = vmatpush1.msra.mxu0 0.0
  %467 = vmatprep.subr.mxu0 0.0
  %468 = vmatpush1.msra.mxu0 0.0
  %469 = vmatprep.subr.mxu0 0.0
  %470 = vmatpush1.msra.mxu0 0.0
  %471 = vmatprep.subr.mxu0 0.0
  %472 = vmatpush1.msra.mxu0 0.0
  %473 = vmatprep.subr.mxu0 0.0
  %474 = vmatpush1.msra.mxu0 0.0
  %475 = vmatprep.subr.mxu0 0.0
  %476 = vmatpush1.msra.mxu0 0.0
  %477 = vmatprep.subr.mxu0 0.0
  %478 = vmatpush1.msra.mxu0 0.0
  %479 = vmatprep.subr.mxu0 0.0
  %480 = vmatpush1.msra.mxu0 0.0
  %481 = vmatprep.subr.mxu0 0.0
  %482 = vmatpush1.msra.mxu0 0.0
  %483 = vmatprep.subr.mxu0 0.0
  %484 = vmatpush1.msra.mxu0 0.0
  %485 = vmatprep.subr.mxu0 0.0
  %486 = vmatpush1.msra.mxu0 0.0
  %487 = vmatprep.subr.mxu0 0.0
  %488 = vmatpush1.msra.mxu0 0.0
  %489 = vmatprep.subr.mxu0 0.0
  %490 = vmatpush1.msra.mxu0 0.0
  %491 = vmatprep.subr.mxu0 0.0
  %492 = vmatpush1.msra.mxu0 0.0
  %493 = vmatprep.subr.mxu0 0.0
  %494 = vmatpush1.msra.mxu0 0.0
  %495 = vmatprep.subr.mxu0 0.0
  %496 = vmatpush1.msra.mxu0 0.0
  %497 = vmatprep.subr.mxu0 0.0
  %498 = vmatpush1.msra.mxu0 0.0
  %499 = vmatprep.subr.mxu0 0.0
  %500 = vmatpush1.msra.mxu0 0.0
  %501 = vmatprep.subr.mxu0 0.0
  %502 = vmatpush1.msra.mxu0 0.0
  %503 = vmatprep.subr.mxu0 0.0
  %504 = vmatpush1.msra.mxu0 0.0
  %505 = vmatprep.subr.mxu0 0.0
  %506 = vmatpush1.msra.mxu0 0.0
  %507 = vmatprep.subr.mxu0 0.0
  %508 = vmatpush1.msra.mxu0 0.0
  %509 = vmatprep.mubr.f32.mxu0 0.0
  %510 = vmatmul.mubr.f32.gmra.mrb[0].mxu0 %v443
  %v511 = vpop.f32.mrb[0].mxu0
  %v512 = vadd.f32 0.0, %v511
  %v513 = vpop.f32.mrb[0].mxu0
  %v514 = vadd.f32 0.0, %v513
  %515 = vdwg.mxu0
  %516 = vrot.lane.b32.xlu0 %v247, 17
  %v517 = vpop.permute.xlu0 %516
  %518 = vrot.lane.b32.xlu0 %v248, 17
  %v519 = vpop.permute.xlu0 %518
  %v520 = vsel %vm256, %v517, %v519
  %v521 = vsel %vm256, %v519, %v517
  %v522 = vmul.f32 %v521, %v263
  %v523 = vmul.f32 %v520, %v267
  %524 = vrot.lane.b32.xlu0 %v247, 16
  %v525 = vpop.permute.xlu0 %524
  %526 = vrot.lane.b32.xlu0 %v248, 16
  %v527 = vpop.permute.xlu0 %526
  %v528 = vsel %vm278, %v525, %v527
  %v529 = vsel %vm278, %v527, %v525
  %v530 = vmul.f32 %v529, %v285
  %v531 = vmul.f32 %v528, %v289
  %532 = vrot.lane.b32.xlu0 %v247, 15
  %v533 = vpop.permute.xlu0 %532
  %534 = vrot.lane.b32.xlu0 %v248, 15
  %v535 = vpop.permute.xlu0 %534
  %v536 = vsel %vm300, %v533, %v535
  %v537 = vsel %vm300, %v535, %v533
  %v538 = vmul.f32 %v537, %v307
  %v539 = vmul.f32 %v536, %v311
  %540 = vrot.lane.b32.xlu0 %v247, 1
  %v541 = vpop.permute.xlu0 %540
  %542 = vrot.lane.b32.xlu0 %v248, 1
  %v543 = vpop.permute.xlu0 %542
  %v544 = vsel %vm322, %v541, %v543
  %v545 = vsel %vm322, %v543, %v541
  %v546 = vmul.f32 %v545, %v329
  %v547 = vmul.f32 %v544, %v333
  %v548 = vmul.f32 %v247, %v344
  %v549 = vmul.f32 %v248, %v348
  %550 = vrot.lane.b32.xlu0 %v247, 127
  %v551 = vpop.permute.xlu0 %550
  %552 = vrot.lane.b32.xlu0 %v248, 127
  %v553 = vpop.permute.xlu0 %552
  %v554 = vsel %vm359, %v551, %v553
  %v555 = vsel %vm359, %v553, %v551
  %v556 = vmul.f32 %v554, %v366
  %v557 = vmul.f32 %v555, %v370
  %558 = vrot.lane.b32.xlu0 %v247, 113
  %v559 = vpop.permute.xlu0 %558
  %560 = vrot.lane.b32.xlu0 %v248, 113
  %v561 = vpop.permute.xlu0 %560
  %v562 = vsel %vm381, %v559, %v561
  %v563 = vsel %vm381, %v561, %v559
  %v564 = vmul.f32 %v562, %v388
  %v565 = vmul.f32 %v563, %v392
  %566 = vrot.lane.b32.xlu0 %v247, 112
  %v567 = vpop.permute.xlu0 %566
  %568 = vrot.lane.b32.xlu0 %v248, 112
  %v569 = vpop.permute.xlu0 %568
  %v570 = vsel %vm403, %v567, %v569
  %v571 = vsel %vm403, %v569, %v567
  %v572 = vmul.f32 %v570, %v410
  %v573 = vmul.f32 %v571, %v414
  %574 = vrot.lane.b32.xlu0 %v247, 111
  %v575 = vpop.permute.xlu0 %574
  %576 = vrot.lane.b32.xlu0 %v248, 111
  %v577 = vpop.permute.xlu0 %576
  %v578 = vsel %vm425, %v575, %v577
  %v579 = vsel %vm425, %v577, %v575
  %v580 = vmul.f32 %v578, %v432
  %v581 = vmul.f32 %v579, %v436
  %582 = vmatprep.subr.mxu0 %v523
  %583 = vmatpush1.msra.mxu0 %v522
  %584 = vmatprep.subr.mxu0 %v531
  %585 = vmatpush1.msra.mxu0 %v530
  %586 = vmatprep.subr.mxu0 %v539
  %587 = vmatpush1.msra.mxu0 %v538
  %588 = vmatprep.subr.mxu0 %v547
  %589 = vmatpush1.msra.mxu0 %v546
  %590 = vmatprep.subr.mxu0 %v549
  %591 = vmatpush1.msra.mxu0 %v548
  %592 = vmatprep.subr.mxu0 %v557
  %593 = vmatpush1.msra.mxu0 %v556
  %594 = vmatprep.subr.mxu0 %v565
  %595 = vmatpush1.msra.mxu0 %v564
  %596 = vmatprep.subr.mxu0 %v573
  %597 = vmatpush1.msra.mxu0 %v572
  %598 = vmatprep.subr.mxu0 %v581
  %599 = vmatpush1.msra.mxu0 %v580
  %600 = vmatprep.subr.mxu0 0.0
  %601 = vmatpush1.msra.mxu0 0.0
  %602 = vmatprep.subr.mxu0 0.0
  %603 = vmatpush1.msra.mxu0 0.0
  %604 = vmatprep.subr.mxu0 0.0
  %605 = vmatpush1.msra.mxu0 0.0
  %606 = vmatprep.subr.mxu0 0.0
  %607 = vmatpush1.msra.mxu0 0.0
  %608 = vmatprep.subr.mxu0 0.0
  %609 = vmatpush1.msra.mxu0 0.0
  %610 = vmatprep.subr.mxu0 0.0
  %611 = vmatpush1.msra.mxu0 0.0
  %612 = vmatprep.subr.mxu0 0.0
  %613 = vmatpush1.msra.mxu0 0.0
  %614 = vmatprep.subr.mxu0 0.0
  %615 = vmatpush1.msra.mxu0 0.0
  %616 = vmatprep.subr.mxu0 0.0
  %617 = vmatpush1.msra.mxu0 0.0
  %618 = vmatprep.subr.mxu0 0.0
  %619 = vmatpush1.msra.mxu0 0.0
  %620 = vmatprep.subr.mxu0 0.0
  %621 = vmatpush1.msra.mxu0 0.0
  %622 = vmatprep.subr.mxu0 0.0
  %623 = vmatpush1.msra.mxu0 0.0
  %624 = vmatprep.subr.mxu0 0.0
  %625 = vmatpush1.msra.mxu0 0.0
  %626 = vmatprep.subr.mxu0 0.0
  %627 = vmatpush1.msra.mxu0 0.0
  %628 = vmatprep.subr.mxu0 0.0
  %629 = vmatpush1.msra.mxu0 0.0
  %630 = vmatprep.subr.mxu0 0.0
  %631 = vmatpush1.msra.mxu0 0.0
  %632 = vmatprep.subr.mxu0 0.0
  %633 = vmatpush1.msra.mxu0 0.0
  %634 = vmatprep.subr.mxu0 0.0
  %635 = vmatpush1.msra.mxu0 0.0
  %636 = vmatprep.subr.mxu0 0.0
  %637 = vmatpush1.msra.mxu0 0.0
  %638 = vmatprep.subr.mxu0 0.0
  %639 = vmatpush1.msra.mxu0 0.0
  %640 = vmatprep.subr.mxu0 0.0
  %641 = vmatpush1.msra.mxu0 0.0
  %642 = vmatprep.subr.mxu0 0.0
  %643 = vmatpush1.msra.mxu0 0.0
  %644 = vmatprep.subr.mxu0 0.0
  %645 = vmatpush1.msra.mxu0 0.0
  %646 = vmatprep.mubr.f32.mxu0 0.0
  %647 = vmatmul.mubr.f32.gmra.mrb[0].mxu0 %v443
  %v648 = vpop.f32.mrb[0].mxu0
  %v649 = vadd.f32 0.0, %v648
  %v650 = vpop.f32.mrb[0].mxu0
  %v651 = vadd.f32 0.0, %v650
  %652 = vdwg.mxu0
  %v653 = vadd.f32 %v512, %v514
  %654 = vadd.xlane.f32.xlu0 %v653
  %v655 = vpop.xlane.xlu0 %654
  %v656 = vadd.f32 %v655, 0.0
  %v657 = vmul.f32 %v512, %v512
  %v658 = vmul.f32 %v514, %v514
  %v659 = vadd.f32 %v657, %v658
  %660 = vadd.xlane.f32.xlu0 %v659
  %v661 = vpop.xlane.xlu0 %660
  %v662 = vadd.f32 %v661, 0.0
  %v663 = vadd.f32 %v649, %v651
  %664 = vadd.xlane.f32.xlu0 %v663
  %v665 = vpop.xlane.xlu0 %664
  %v666 = vadd.f32 %v656, %v665
  %v667 = vmul.f32 %v649, %v649
  %v668 = vmul.f32 %v651, %v651
  %v669 = vadd.f32 %v667, %v668
  %670 = vadd.xlane.f32.xlu0 %v669
  %v671 = vpop.xlane.xlu0 %670
  %v672 = vadd.f32 %v662, %v671
  %v673 = vmul.f32 %v666, 0.001953125
  %v674 = vmul.f32 %v672, 0.001953125
  %v675 = vmul.f32 %v673, %v673
  %v676 = vsub.f32 %v674, %v675
  %v677 = vld [vmem:[%s5] sm:$0xff]
  %v678 = vadd.f32 %v676, 1e-05
  %v679 = vrsqrt.pop %v678
  %v680 = vmul.f32 %v677, %v679
  %v681 = vld [vmem:[%s6] sm:$0xff]
  %v682 = vmul.f32 %v673, %v680
  %v683 = vsub.f32 %v681, %v682
  %685 = vset.pattern.permute.xlu0 0
  %686 = vperm.xlu0 %685, %v680
  %v687 = vpop.permute.xlu0 %686
  %v689 = vmul.f32 %v512, %v687
  %v690 = vmul.f32 %v514, %v687
  %692 = vset.pattern.permute.xlu0 0
  %693 = vperm.xlu0 %692, %v683
  %v694 = vpop.permute.xlu0 %693
  %v696 = vadd.f32 %v689, %v694
  %v697 = vadd.f32 %v690, %v694
  %v698 = vadd.f32 %v696, %v36
  %v699 = vadd.f32 %v697, %v37
  %vm700 = vcmp.gt.f32.partialorder %v698, 0.0
  %vm701 = vcmp.gt.f32.partialorder %v699, 0.0
  %v702 = vmul.f32 %v238, %v698
  %v703 = vmul.f32 %v238, %v699
  %v704 = vsel %vm700, %v698, %v702
  %v705 = vsel %vm701, %v699, %v703
  %706 = vst [vmem:[%s9] sm:$0xff] %v704
  %707 = vst [vmem:[%s9 + $0x8] sm:$0xff] %v705
  %v708 = vmul.f32 %v649, %v687
  %v709 = vmul.f32 %v651, %v687
  %v710 = vadd.f32 %v708, %v694
  %v711 = vadd.f32 %v709, %v694
  %v712 = vld [vmem:[%s113] sm:$0xff]
  %v713 = vld [vmem:[%s113 + $0x8] sm:$0xff]
  %v714 = vadd.f32 %v710, %v712
  %v715 = vadd.f32 %v711, %v713
  %vm716 = vcmp.gt.f32.partialorder %v714, 0.0
  %vm717 = vcmp.gt.f32.partialorder %v715, 0.0
  %v718 = vmul.f32 %v238, %v714
  %v719 = vmul.f32 %v238, %v715
  %v720 = vsel %vm716, %v714, %v718
  %v721 = vsel %vm717, %v715, %v719
  %s722 = scalar_lea.vmem %s9, 16
  %723 = vst [vmem:[%s722] sm:$0xff] %v720
  %724 = vst [vmem:[%s722 + $0x8] sm:$0xff] %v721
  // Predicated region
  $region38: #{resblock_pallas.1} parent=0 // pred_check
    _
  $region39: #{resblock_pallas.1} parent=0 // pred_check_branch
    %726 = sbr.rel (0) target = $region41
  $region40: #{resblock_pallas.1} parent=0 // pred_region
    _
  $region41: #{resblock_pallas.1} parent=0 // pred_fallthru
    _
  // Predicated region
  $region42: #{resblock_pallas.1} parent=0 // pred_check
    _
  $region43: #{resblock_pallas.1} parent=0 // pred_check_branch
    %728 = sbr.rel (0) target = $region45
  $region44: #{resblock_pallas.1} parent=0 // pred_region
    _
  $region45: #{resblock_pallas.1} parent=0 // pred_fallthru
    _

</llo_original>
